<compile_context>
chip_gen: v7x
topology: tpu7x:2x2x1
jax: 0.10.0
libtpu: 0.0.40
codegen_flags: <defaults>
</compile_context>

<pallas_src>
import functools

import jax
import jax.numpy as jnp
import numpy as np
from jax.experimental import pallas as pl
from jax.experimental.pallas import tpu as pltpu

BN_EPS = 1e-5
LANE = 128


def _round_up(n, m):
    return ((n + m - 1) // m) * m


def _vmem_capacity_bytes():
    """Generation-aware physical VMEM capacity (v5e/v6e: 128 MiB, v7x: 64 MiB)."""
    try:
        cap = int(pltpu.get_tpu_info().vmem_capacity_bytes)
        if cap > 0:
            return cap
    except Exception:
        pass
    return 64 * (1 << 20)  # conservative fallback = v7x per-core VMEM


# ---------------------------------------------------------------------------
# One [BatchNorm1d(train) -> activation -> Linear] block on f32 activations.
# Shared by both kernel bodies.
# ---------------------------------------------------------------------------
def _bn_act_linear(x, gamma, beta, w, b, *, use_bn, act):
    if use_bn:
        inv_n = jnp.float32(1.0 / x.shape[0])
        # Shifted one-pass batch stats (pivot = row 0): avoids catastrophic
        # cancellation of plain E[x^2]-E[x]^2 while keeping a single pass of
        # cross-sublane reductions (two reduces per layer).
        pivot = x[0:1, :]
        d = x - pivot
        s = jnp.sum(d, axis=0, keepdims=True)                 # (1, F)
        sq = jnp.sum(d * d, axis=0, keepdims=True)            # (1, F)
        mean_d = s * inv_n
        var = jnp.maximum(sq * inv_n - mean_d * mean_d, 0.0)  # biased var (train BN)
        mean = pivot + mean_d
        # Fold BN into one scale/shift pass over (B, F): 1 mul + 1 add.
        scale = gamma * jax.lax.rsqrt(var + BN_EPS)            # rsqrt -> EUP slot
        shift = beta - mean * scale
        x = x * scale + shift
    if act == "ReLU":
        x = jnp.maximum(x, 0.0)
    elif act == "Sigmoid":
        x = jax.nn.sigmoid(x)                                  # exp -> EUP slot
    if w.dtype == jnp.float32:
        # f32 parity mode.
        y = jnp.dot(x, w, preferred_element_type=jnp.float32,
                    precision=jax.lax.Precision.HIGHEST)
    else:
        # bf16 MXU feed, f32 accumulation; weights are already bf16 (pre-cast).
        y = jnp.dot(x.astype(w.dtype), w, preferred_element_type=jnp.float32)
    return y + b


# ---------------------------------------------------------------------------
# Kernel A (resident): whole head in one grid-less call; activation + all
# weights stay in VMEM/vregs, static unroll over at most 5 layers.
# refs: x (B,F), gammas (L,1,F), betas (L,1,F), weights (L,F,F), biases (L,1,F)
# ---------------------------------------------------------------------------
def _resident_head_kernel(x_ref, g_ref, be_ref, w_ref, b_ref, out_ref, *,
                          num_layers, use_bn, act):
    x = x_ref[...].astype(jnp.float32)
    for i in range(num_layers):                 # static unroll, num_layers <= 5
        x = _bn_act_linear(x, g_ref[i], be_ref[i], w_ref[i], b_ref[i],
                           use_bn=use_bn, act=act)
    out_ref[...] = x.astype(out_ref.dtype)


# ---------------------------------------------------------------------------
# Kernel B (streaming): grid=(L,), one layer per grid step.  The activation
# lives in a persistent VMEM scratch; the layer's weight slab is auto-pipelined
# (Buffered(2)) so the next layer's DMA overlaps this layer's matmul.
# ---------------------------------------------------------------------------
def _streaming_head_kernel(x_ref, g_ref, be_ref, w_ref, b_ref, out_ref, act_ref,
                           *, use_bn, act):
    l = pl.program_id(0)

    @pl.when(l == 0)
    def _():
        act_ref[...] = x_ref[...].astype(jnp.float32)

    y = _bn_act_linear(act_ref[...], g_ref[...], be_ref[...], w_ref[...],
                       b_ref[...], use_bn=use_bn, act=act)
    act_ref[...] = y

    @pl.when(l == pl.num_programs(0) - 1)
    def _():
        out_ref[...] = y.astype(out_ref.dtype)


# ---------------------------------------------------------------------------
# Parameter init mirroring InferenceHead.__init__ (logical, un-padded shapes).
#   fc_* weights -> ones (weights_init_ones); fc_* biases -> U(-1/sqrt(d), 1/sqrt(d))
#   (PyTorch Linear default, seeded here); bn_* gamma=1, beta=0 (PyTorch default).
# Weights are stored pre-transposed as (D_in, D_out) so the kernel does x @ W.
# ---------------------------------------------------------------------------
def make_inference_head_params(key, size_bottom_out, num_classes):
    d = size_bottom_out
    bound = 1.0 / np.sqrt(float(d))
    keys = jax.random.split(key, 5)
    params = {}
    for i in range(4):
        params["fc_%d" % (i + 1)] = {
            "w": jnp.ones((d, d), jnp.float32),
            "b": jax.random.uniform(keys[i], (1, d), jnp.float32,
                                    minval=-bound, maxval=bound),
        }
        params["bn_%d" % (i + 1)] = {
            "gamma": jnp.ones((1, d), jnp.float32),
            "beta": jnp.zeros((1, d), jnp.float32),
        }
    params["fc_final"] = {
        "w": jnp.ones((d, num_classes), jnp.float32),
        "b": jax.random.uniform(keys[4], (1, num_classes), jnp.float32,
                                minval=-bound, maxval=bound),
    }
    params["bn_final"] = {
        "gamma": jnp.ones((1, d), jnp.float32),
        "beta": jnp.zeros((1, d), jnp.float32),
    }
    return params


# ---------------------------------------------------------------------------
# ONE-TIME parameter prep: apply the num_layer gating, pad every feature axis
# to a single lane-dense width F (multiple of 128), pre-cast weights to bf16,
# and stack per-layer tensors so the kernels can index / stream them.
# Zero-padded weights/biases/beta (gamma padded with 1) keep the math exact.
# ---------------------------------------------------------------------------
def prepare_head_params(params, *, num_layer, weight_dtype=jnp.bfloat16):
    d = params["fc_final"]["w"].shape[0]
    num_classes = params["fc_final"]["w"].shape[1]
    fp = max(_round_up(d, LANE), _round_up(num_classes, LANE))

    num_hidden = max(0, min(int(num_layer), 5) - 1)  # num_layer>=2..5 gating chain
    names = [("bn_%d" % (k + 1), "fc_%d" % (k + 1)) for k in range(num_hidden)]
    names.append(("bn_final", "fc_final"))

    def pad_vec(v, fill):
        return jnp.pad(v, ((0, 0), (0, fp - v.shape[1])), constant_values=fill)

    def pad_mat(w):
        return jnp.pad(w, ((0, fp - w.shape[0]), (0, fp - w.shape[1])))

    gammas = jnp.stack([pad_vec(params[bn]["gamma"], 1.0) for bn, _ in names])
    betas = jnp.stack([pad_vec(params[bn]["beta"], 0.0) for bn, _ in names])
    weights = jnp.stack([pad_mat(params[fc]["w"]) for _, fc in names]).astype(weight_dtype)
    biases = jnp.stack([pad_vec(params[fc]["b"], 0.0) for _, fc in names])

    return dict(gammas=gammas, betas=betas, weights=weights, biases=biases,
                num_layers=num_hidden + 1, d=d, num_classes=num_classes, fp=fp)


# ---------------------------------------------------------------------------
# Forward pass matching InferenceHead.forward (bottom_model = identity,
# BatchNorm1d in training mode = batch statistics).
# ---------------------------------------------------------------------------
def inference_head_forward(prep, x, *, activation_func_type="ReLU", use_bn=True,
                           force_streaming=False):
    assert activation_func_type in ("ReLU", "Sigmoid", "None")
    act = activation_func_type
    B, d = x.shape
    assert d == prep["d"], "input feature width must equal size_bottom_out"
    if use_bn:
        assert B >= 2, "BatchNorm1d training-mode statistics need batch size >= 2"

    fp = prep["fp"]
    L = prep["num_layers"]
    num_classes = prep["num_classes"]
    gammas, betas, weights, biases = (prep["gammas"], prep["betas"],
                                      prep["weights"], prep["biases"])

    # Per-call work: pad only the activation (params are pre-padded / pre-cast).
    xp = x.astype(jnp.float32)
    if fp != d:
        xp = jnp.pad(xp, ((0, 0), (0, fp - d)))

    # --- generation-aware VMEM budgeting -----------------------------------
    act_bytes = B * fp * 4
    w_layer_bytes = fp * fp * weights.dtype.itemsize
    small_bytes = 3 * L * fp * 4                      # gammas + betas + biases
    out_bytes = B * fp * 4
    in_bytes = act_bytes + L * w_layer_bytes + small_bytes

    capacity = _vmem_capacity_bytes()
    vmem_cap = int(0.8 * capacity)                    # ~51 MiB v7x, ~102 MiB v5e/v6e

    def with_headroom(b):                             # ~30% + 4 MiB compiler scratch
        return int(1.3 * b) + (4 << 20)

    # Explicit live sets: x + two f32 activation work buffers + output + the
    # weights that are actually resident (all L for path A, 2 buffered for B).
    live_resident = 3 * act_bytes + out_bytes + L * w_layer_bytes + small_bytes
    live_stream = 4 * act_bytes + out_bytes + 2 * w_layer_bytes + small_bytes

    use_resident = (not force_streaming) and (
        with_headroom(live_resident) <= int(0.7 * capacity))

    cost = pl.CostEstimate(
        flops=2 * B * fp * fp * L,
        transcendentals=(L * fp if use_bn else 0)
        + (B * fp * L if act == "Sigmoid" else 0),
        bytes_accessed=in_bytes + out_bytes)

    out_shape = jax.ShapeDtypeStruct((B, fp), jnp.float32)

    if use_resident:
        vmem_limit = min(vmem_cap, max(with_headroom(live_resident), 16 << 20))
        kernel = functools.partial(_resident_head_kernel, num_layers=L,
                                   use_bn=use_bn, act=act)
        out_p = pl.pallas_call(
            kernel,
            out_shape=out_shape,
            in_specs=[pl.BlockSpec(memory_space=pltpu.MemorySpace.VMEM)] * 5,
            out_specs=pl.BlockSpec(memory_space=pltpu.MemorySpace.VMEM),
            compiler_params=pltpu.CompilerParams(vmem_limit_bytes=vmem_limit),
            cost_estimate=cost,
        )(xp, gammas, betas, weights, biases)
    else:
        if with_headroom(live_stream) > vmem_cap:
            # TODO(synk): K/N-tiled weight streaming for very large size_bottom_out.
            raise NotImplementedError(
                "size_bottom_out too large for the layer-streaming kernel")
        vmem_limit = min(vmem_cap, max(with_headroom(live_stream), 16 << 20))
        kernel = functools.partial(_streaming_head_kernel, use_bn=use_bn, act=act)
        out_p = pl.pallas_call(
            kernel,
            out_shape=out_shape,
            grid=(L,),
            in_specs=[
                pl.BlockSpec((B, fp), lambda l: (0, 0)),            # x, resident
                pl.BlockSpec((None, 1, fp), lambda l: (l, 0, 0)),   # gamma_l
                pl.BlockSpec((None, 1, fp), lambda l: (l, 0, 0)),   # beta_l
                pl.BlockSpec((None, fp, fp), lambda l: (l, 0, 0),   # W_l, streamed
                             pipeline_mode=pl.Buffered(2)),
                pl.BlockSpec((None, 1, fp), lambda l: (l, 0, 0)),   # b_l
            ],
            out_specs=pl.BlockSpec((B, fp), lambda l: (0, 0)),
            scratch_shapes=[pltpu.VMEM((B, fp), jnp.float32)],      # persistent act
            compiler_params=pltpu.CompilerParams(
                dimension_semantics=("arbitrary",),
                vmem_limit_bytes=vmem_limit),
            cost_estimate=cost,
        )(xp, gammas, betas, weights, biases)

    return out_p[:, :num_classes]


# ---------------------------------------------------------------------------
# Pure-JAX reference for correctness validation.  `matmul_dtype` lets us check
# the bf16-fed kernel against a reference that makes the same (intentional)
# bf16 matmul-input choice while keeping all BN/activation math in f32.
# ---------------------------------------------------------------------------
def reference_forward(params, x, *, num_layer, activation_func_type="ReLU",
                      use_bn=True, matmul_dtype=jnp.float32):
    def act_fn(v):
        if activation_func_type == "ReLU":
            return jnp.maximum(v, 0.0)
        if activation_func_type == "Sigmoid":
            return jax.nn.sigmoid(v)
        return v

    def block(v, bn, fc):
        if use_bn:
            mean = jnp.mean(v, axis=0, keepdims=True)
            var = jnp.mean((v - mean) ** 2, axis=0, keepdims=True)
            v = ((v - mean) * jax.lax.rsqrt(var + BN_EPS)
                 * params[bn]["gamma"] + params[bn]["beta"])
        v = act_fn(v)
        y = jnp.dot(v.astype(matmul_dtype), params[fc]["w"].astype(matmul_dtype),
                    preferred_element_type=jnp.float32)
        return y + params[fc]["b"]

    num_hidden = max(0, min(int(num_layer), 5) - 1)
    for k in range(num_hidden):
        x = block(x, "bn_%d" % (k + 1), "fc_%d" % (k + 1))
    return block(x, "bn_final", "fc_final")


if __name__ == "__main__":
    B = 8                  # batch (>1 so training-mode BN stats are defined)
    SIZE_BOTTOM_OUT = 32   # feature width of the bottom model output
    NUM_CLASSES = 4

    key = jax.random.PRNGKey(0)
    k_x, k_p = jax.random.split(key)
    x = jax.random.normal(k_x, (B, SIZE_BOTTOM_OUT), jnp.float32)
    params = make_inference_head_params(k_p, SIZE_BOTTOM_OUT, NUM_CLASSES)

    # (num_layer, force_streaming): exercise the resident path, the layer-
    # streaming path, and the minimal 1-layer head.
    for num_layer, force_streaming in [(5, False), (5, True), (1, False)]:
        prep = prepare_head_params(params, num_layer=num_layer,
                                   weight_dtype=jnp.bfloat16)
        out = inference_head_forward(prep, x, activation_func_type="ReLU",
                                     use_bn=True,
                                     force_streaming=force_streaming)
        out = jax.block_until_ready(out)
        assert out.shape == (B, NUM_CLASSES) and out.dtype == jnp.float32
        ref = reference_forward(params, x, num_layer=num_layer,
                                activation_func_type="ReLU", use_bn=True,
                                matmul_dtype=jnp.bfloat16)
        np.testing.assert_allclose(np.asarray(out), np.asarray(ref),
                                   rtol=1e-2, atol=1e-2)

    print("KERNEL_OK")
</pallas_src>

<mosaic_0001>
module attributes {stable_mosaic.version = 11 : i64} {
  func.func @_resident_head_kernel(%arg0: memref<8x128xf32, #tpu.memory_space<vmem>>, %arg1: memref<5x1x128xf32, #tpu.memory_space<vmem>>, %arg2: memref<5x1x128xf32, #tpu.memory_space<vmem>>, %arg3: memref<5x128x128xbf16, #tpu.memory_space<vmem>>, %arg4: memref<5x1x128xf32, #tpu.memory_space<vmem>>, %arg5: memref<8x128xf32, #tpu.memory_space<vmem>>) attributes {dimension_semantics = [], scalar_prefetch = 0 : i64, scratch_operands = 0 : i64, tpu.core_type = #tpu.core_type<tc>} {
    %c0 = arith.constant 0 : index
    %c0_0 = arith.constant 0 : index
    %0 = vector.load %arg0[%c0, %c0_0] : memref<8x128xf32, #tpu.memory_space<vmem>>, vector<8x128xf32>
    %c0_1 = arith.constant 0 : index
    %c0_2 = arith.constant 0 : index
    %c0_3 = arith.constant 0 : index
    %1 = vector.load %arg1[%c0_1, %c0_2, %c0_3] : memref<5x1x128xf32, #tpu.memory_space<vmem>>, vector<1x1x128xf32>
    %2 = vector.shape_cast %1 : vector<1x1x128xf32> to vector<1x128xf32>
    %c0_4 = arith.constant 0 : index
    %c0_5 = arith.constant 0 : index
    %c0_6 = arith.constant 0 : index
    %3 = vector.load %arg2[%c0_4, %c0_5, %c0_6] : memref<5x1x128xf32, #tpu.memory_space<vmem>>, vector<1x1x128xf32>
    %4 = vector.shape_cast %3 : vector<1x1x128xf32> to vector<1x128xf32>
    %c0_7 = arith.constant 0 : index
    %c0_8 = arith.constant 0 : index
    %c0_9 = arith.constant 0 : index
    %5 = vector.load %arg3[%c0_7, %c0_8, %c0_9] : memref<5x128x128xbf16, #tpu.memory_space<vmem>>, vector<1x128x128xbf16>
    %6 = vector.shape_cast %5 : vector<1x128x128xbf16> to vector<128x128xbf16>
    %c0_10 = arith.constant 0 : index
    %c0_11 = arith.constant 0 : index
    %c0_12 = arith.constant 0 : index
    %7 = vector.load %arg4[%c0_10, %c0_11, %c0_12] : memref<5x1x128xf32, #tpu.memory_space<vmem>>, vector<1x1x128xf32>
    %8 = vector.shape_cast %7 : vector<1x1x128xf32> to vector<1x128xf32>
    %9 = vector.extract_strided_slice %0 {offsets = [0, 0], sizes = [1, 128], strides = [1, 1]} : vector<8x128xf32> to vector<1x128xf32>
    %10 = vector.broadcast %9 : vector<1x128xf32> to vector<8x128xf32>
    %11 = arith.subf %0, %10 : vector<8x128xf32>
    %cst = arith.constant dense<0.000000e+00> : vector<128xf32>
    %12 = vector.multi_reduction <add>, %11, %cst [0] : vector<8x128xf32> to vector<128xf32>
    %13 = vector.shape_cast %12 : vector<128xf32> to vector<1x128xf32>
    %14 = arith.mulf %11, %11 : vector<8x128xf32>
    %cst_13 = arith.constant dense<0.000000e+00> : vector<128xf32>
    %15 = vector.multi_reduction <add>, %14, %cst_13 [0] : vector<8x128xf32> to vector<128xf32>
    %16 = vector.shape_cast %15 : vector<128xf32> to vector<1x128xf32>
    %cst_14 = arith.constant 1.250000e-01 : f32
    %17 = vector.broadcast %cst_14 : f32 to vector<1x128xf32>
    %18 = arith.mulf %13, %17 : vector<1x128xf32>
    %cst_15 = arith.constant 1.250000e-01 : f32
    %19 = vector.broadcast %cst_15 : f32 to vector<1x128xf32>
    %20 = arith.mulf %16, %19 : vector<1x128xf32>
    %21 = arith.mulf %18, %18 : vector<1x128xf32>
    %22 = arith.subf %20, %21 : vector<1x128xf32>
    %cst_16 = arith.constant 0.000000e+00 : f32
    %23 = vector.broadcast %cst_16 : f32 to vector<1x128xf32>
    %24 = arith.maximumf %22, %23 : vector<1x128xf32>
    %25 = arith.addf %9, %18 : vector<1x128xf32>
    %cst_17 = arith.constant 9.99999974E-6 : f32
    %26 = vector.broadcast %cst_17 : f32 to vector<1x128xf32>
    %27 = arith.addf %24, %26 : vector<1x128xf32>
    %28 = math.rsqrt %27 : vector<1x128xf32>
    %29 = arith.mulf %2, %28 : vector<1x128xf32>
    %30 = arith.mulf %25, %29 : vector<1x128xf32>
    %31 = arith.subf %4, %30 : vector<1x128xf32>
    %32 = vector.broadcast %29 : vector<1x128xf32> to vector<8x128xf32>
    %33 = arith.mulf %0, %32 : vector<8x128xf32>
    %34 = vector.broadcast %31 : vector<1x128xf32> to vector<8x128xf32>
    %35 = arith.addf %33, %34 : vector<8x128xf32>
    %cst_18 = arith.constant 0.000000e+00 : f32
    %36 = vector.broadcast %cst_18 : f32 to vector<8x128xf32>
    %37 = arith.maximumf %35, %36 : vector<8x128xf32>
    %38 = arith.truncf %37 : vector<8x128xf32> to vector<8x128xbf16>
    %cst_19 = arith.constant dense<0.000000e+00> : vector<8x128xf32>
    %39 = tpu.matmul %38, %6, %cst_19 {dimension_numbers = #tpu.dot_dimension_numbers<[1], [0], [0], [1], [0, 0, 1, 1], [], []>} : vector<8x128xbf16>, vector<128x128xbf16>, vector<8x128xf32> -> vector<8x128xf32>
    %40 = vector.broadcast %8 : vector<1x128xf32> to vector<8x128xf32>
    %41 = arith.addf %39, %40 : vector<8x128xf32>
    %c1 = arith.constant 1 : index
    %c0_20 = arith.constant 0 : index
    %c0_21 = arith.constant 0 : index
    %42 = vector.load %arg1[%c1, %c0_20, %c0_21] : memref<5x1x128xf32, #tpu.memory_space<vmem>>, vector<1x1x128xf32>
    %43 = vector.shape_cast %42 : vector<1x1x128xf32> to vector<1x128xf32>
    %c1_22 = arith.constant 1 : index
    %c0_23 = arith.constant 0 : index
    %c0_24 = arith.constant 0 : index
    %44 = vector.load %arg2[%c1_22, %c0_23, %c0_24] : memref<5x1x128xf32, #tpu.memory_space<vmem>>, vector<1x1x128xf32>
    %45 = vector.shape_cast %44 : vector<1x1x128xf32> to vector<1x128xf32>
    %c1_25 = arith.constant 1 : index
    %c0_26 = arith.constant 0 : index
    %c0_27 = arith.constant 0 : index
    %46 = vector.load %arg3[%c1_25, %c0_26, %c0_27] : memref<5x128x128xbf16, #tpu.memory_space<vmem>>, vector<1x128x128xbf16>
    %47 = vector.shape_cast %46 : vector<1x128x128xbf16> to vector<128x128xbf16>
    %c1_28 = arith.constant 1 : index
    %c0_29 = arith.constant 0 : index
    %c0_30 = arith.constant 0 : index
    %48 = vector.load %arg4[%c1_28, %c0_29, %c0_30] : memref<5x1x128xf32, #tpu.memory_space<vmem>>, vector<1x1x128xf32>
    %49 = vector.shape_cast %48 : vector<1x1x128xf32> to vector<1x128xf32>
    %50 = vector.extract_strided_slice %41 {offsets = [0, 0], sizes = [1, 128], strides = [1, 1]} : vector<8x128xf32> to vector<1x128xf32>
    %51 = vector.broadcast %50 : vector<1x128xf32> to vector<8x128xf32>
    %52 = arith.subf %41, %51 : vector<8x128xf32>
    %cst_31 = arith.constant dense<0.000000e+00> : vector<128xf32>
    %53 = vector.multi_reduction <add>, %52, %cst_31 [0] : vector<8x128xf32> to vector<128xf32>
    %54 = vector.shape_cast %53 : vector<128xf32> to vector<1x128xf32>
    %55 = arith.mulf %52, %52 : vector<8x128xf32>
    %cst_32 = arith.constant dense<0.000000e+00> : vector<128xf32>
    %56 = vector.multi_reduction <add>, %55, %cst_32 [0] : vector<8x128xf32> to vector<128xf32>
    %57 = vector.shape_cast %56 : vector<128xf32> to vector<1x128xf32>
    %cst_33 = arith.constant 1.250000e-01 : f32
    %58 = vector.broadcast %cst_33 : f32 to vector<1x128xf32>
    %59 = arith.mulf %54, %58 : vector<1x128xf32>
    %cst_34 = arith.constant 1.250000e-01 : f32
    %60 = vector.broadcast %cst_34 : f32 to vector<1x128xf32>
    %61 = arith.mulf %57, %60 : vector<1x128xf32>
    %62 = arith.mulf %59, %59 : vector<1x128xf32>
    %63 = arith.subf %61, %62 : vector<1x128xf32>
    %cst_35 = arith.constant 0.000000e+00 : f32
    %64 = vector.broadcast %cst_35 : f32 to vector<1x128xf32>
    %65 = arith.maximumf %63, %64 : vector<1x128xf32>
    %66 = arith.addf %50, %59 : vector<1x128xf32>
    %cst_36 = arith.constant 9.99999974E-6 : f32
    %67 = vector.broadcast %cst_36 : f32 to vector<1x128xf32>
    %68 = arith.addf %65, %67 : vector<1x128xf32>
    %69 = math.rsqrt %68 : vector<1x128xf32>
    %70 = arith.mulf %43, %69 : vector<1x128xf32>
    %71 = arith.mulf %66, %70 : vector<1x128xf32>
    %72 = arith.subf %45, %71 : vector<1x128xf32>
    %73 = vector.broadcast %70 : vector<1x128xf32> to vector<8x128xf32>
    %74 = arith.mulf %41, %73 : vector<8x128xf32>
    %75 = vector.broadcast %72 : vector<1x128xf32> to vector<8x128xf32>
    %76 = arith.addf %74, %75 : vector<8x128xf32>
    %cst_37 = arith.constant 0.000000e+00 : f32
    %77 = vector.broadcast %cst_37 : f32 to vector<8x128xf32>
    %78 = arith.maximumf %76, %77 : vector<8x128xf32>
    %79 = arith.truncf %78 : vector<8x128xf32> to vector<8x128xbf16>
    %cst_38 = arith.constant dense<0.000000e+00> : vector<8x128xf32>
    %80 = tpu.matmul %79, %47, %cst_38 {dimension_numbers = #tpu.dot_dimension_numbers<[1], [0], [0], [1], [0, 0, 1, 1], [], []>} : vector<8x128xbf16>, vector<128x128xbf16>, vector<8x128xf32> -> vector<8x128xf32>
    %81 = vector.broadcast %49 : vector<1x128xf32> to vector<8x128xf32>
    %82 = arith.addf %80, %81 : vector<8x128xf32>
    %c2 = arith.constant 2 : index
    %c0_39 = arith.constant 0 : index
    %c0_40 = arith.constant 0 : index
    %83 = vector.load %arg1[%c2, %c0_39, %c0_40] : memref<5x1x128xf32, #tpu.memory_space<vmem>>, vector<1x1x128xf32>
    %84 = vector.shape_cast %83 : vector<1x1x128xf32> to vector<1x128xf32>
    %c2_41 = arith.constant 2 : index
    %c0_42 = arith.constant 0 : index
    %c0_43 = arith.constant 0 : index
    %85 = vector.load %arg2[%c2_41, %c0_42, %c0_43] : memref<5x1x128xf32, #tpu.memory_space<vmem>>, vector<1x1x128xf32>
    %86 = vector.shape_cast %85 : vector<1x1x128xf32> to vector<1x128xf32>
    %c2_44 = arith.constant 2 : index
    %c0_45 = arith.constant 0 : index
    %c0_46 = arith.constant 0 : index
    %87 = vector.load %arg3[%c2_44, %c0_45, %c0_46] : memref<5x128x128xbf16, #tpu.memory_space<vmem>>, vector<1x128x128xbf16>
    %88 = vector.shape_cast %87 : vector<1x128x128xbf16> to vector<128x128xbf16>
    %c2_47 = arith.constant 2 : index
    %c0_48 = arith.constant 0 : index
    %c0_49 = arith.constant 0 : index
    %89 = vector.load %arg4[%c2_47, %c0_48, %c0_49] : memref<5x1x128xf32, #tpu.memory_space<vmem>>, vector<1x1x128xf32>
    %90 = vector.shape_cast %89 : vector<1x1x128xf32> to vector<1x128xf32>
    %91 = vector.extract_strided_slice %82 {offsets = [0, 0], sizes = [1, 128], strides = [1, 1]} : vector<8x128xf32> to vector<1x128xf32>
    %92 = vector.broadcast %91 : vector<1x128xf32> to vector<8x128xf32>
    %93 = arith.subf %82, %92 : vector<8x128xf32>
    %cst_50 = arith.constant dense<0.000000e+00> : vector<128xf32>
    %94 = vector.multi_reduction <add>, %93, %cst_50 [0] : vector<8x128xf32> to vector<128xf32>
    %95 = vector.shape_cast %94 : vector<128xf32> to vector<1x128xf32>
    %96 = arith.mulf %93, %93 : vector<8x128xf32>
    %cst_51 = arith.constant dense<0.000000e+00> : vector<128xf32>
    %97 = vector.multi_reduction <add>, %96, %cst_51 [0] : vector<8x128xf32> to vector<128xf32>
    %98 = vector.shape_cast %97 : vector<128xf32> to vector<1x128xf32>
    %cst_52 = arith.constant 1.250000e-01 : f32
    %99 = vector.broadcast %cst_52 : f32 to vector<1x128xf32>
    %100 = arith.mulf %95, %99 : vector<1x128xf32>
    %cst_53 = arith.constant 1.250000e-01 : f32
    %101 = vector.broadcast %cst_53 : f32 to vector<1x128xf32>
    %102 = arith.mulf %98, %101 : vector<1x128xf32>
    %103 = arith.mulf %100, %100 : vector<1x128xf32>
    %104 = arith.subf %102, %103 : vector<1x128xf32>
    %cst_54 = arith.constant 0.000000e+00 : f32
    %105 = vector.broadcast %cst_54 : f32 to vector<1x128xf32>
    %106 = arith.maximumf %104, %105 : vector<1x128xf32>
    %107 = arith.addf %91, %100 : vector<1x128xf32>
    %cst_55 = arith.constant 9.99999974E-6 : f32
    %108 = vector.broadcast %cst_55 : f32 to vector<1x128xf32>
    %109 = arith.addf %106, %108 : vector<1x128xf32>
    %110 = math.rsqrt %109 : vector<1x128xf32>
    %111 = arith.mulf %84, %110 : vector<1x128xf32>
    %112 = arith.mulf %107, %111 : vector<1x128xf32>
    %113 = arith.subf %86, %112 : vector<1x128xf32>
    %114 = vector.broadcast %111 : vector<1x128xf32> to vector<8x128xf32>
    %115 = arith.mulf %82, %114 : vector<8x128xf32>
    %116 = vector.broadcast %113 : vector<1x128xf32> to vector<8x128xf32>
    %117 = arith.addf %115, %116 : vector<8x128xf32>
    %cst_56 = arith.constant 0.000000e+00 : f32
    %118 = vector.broadcast %cst_56 : f32 to vector<8x128xf32>
    %119 = arith.maximumf %117, %118 : vector<8x128xf32>
    %120 = arith.truncf %119 : vector<8x128xf32> to vector<8x128xbf16>
    %cst_57 = arith.constant dense<0.000000e+00> : vector<8x128xf32>
    %121 = tpu.matmul %120, %88, %cst_57 {dimension_numbers = #tpu.dot_dimension_numbers<[1], [0], [0], [1], [0, 0, 1, 1], [], []>} : vector<8x128xbf16>, vector<128x128xbf16>, vector<8x128xf32> -> vector<8x128xf32>
    %122 = vector.broadcast %90 : vector<1x128xf32> to vector<8x128xf32>
    %123 = arith.addf %121, %122 : vector<8x128xf32>
    %c3 = arith.constant 3 : index
    %c0_58 = arith.constant 0 : index
    %c0_59 = arith.constant 0 : index
    %124 = vector.load %arg1[%c3, %c0_58, %c0_59] : memref<5x1x128xf32, #tpu.memory_space<vmem>>, vector<1x1x128xf32>
    %125 = vector.shape_cast %124 : vector<1x1x128xf32> to vector<1x128xf32>
    %c3_60 = arith.constant 3 : index
    %c0_61 = arith.constant 0 : index
    %c0_62 = arith.constant 0 : index
    %126 = vector.load %arg2[%c3_60, %c0_61, %c0_62] : memref<5x1x128xf32, #tpu.memory_space<vmem>>, vector<1x1x128xf32>
    %127 = vector.shape_cast %126 : vector<1x1x128xf32> to vector<1x128xf32>
    %c3_63 = arith.constant 3 : index
    %c0_64 = arith.constant 0 : index
    %c0_65 = arith.constant 0 : index
    %128 = vector.load %arg3[%c3_63, %c0_64, %c0_65] : memref<5x128x128xbf16, #tpu.memory_space<vmem>>, vector<1x128x128xbf16>
    %129 = vector.shape_cast %128 : vector<1x128x128xbf16> to vector<128x128xbf16>
    %c3_66 = arith.constant 3 : index
    %c0_67 = arith.constant 0 : index
    %c0_68 = arith.constant 0 : index
    %130 = vector.load %arg4[%c3_66, %c0_67, %c0_68] : memref<5x1x128xf32, #tpu.memory_space<vmem>>, vector<1x1x128xf32>
    %131 = vector.shape_cast %130 : vector<1x1x128xf32> to vector<1x128xf32>
    %132 = vector.extract_strided_slice %123 {offsets = [0, 0], sizes = [1, 128], strides = [1, 1]} : vector<8x128xf32> to vector<1x128xf32>
    %133 = vector.broadcast %132 : vector<1x128xf32> to vector<8x128xf32>
    %134 = arith.subf %123, %133 : vector<8x128xf32>
    %cst_69 = arith.constant dense<0.000000e+00> : vector<128xf32>
    %135 = vector.multi_reduction <add>, %134, %cst_69 [0] : vector<8x128xf32> to vector<128xf32>
    %136 = vector.shape_cast %135 : vector<128xf32> to vector<1x128xf32>
    %137 = arith.mulf %134, %134 : vector<8x128xf32>
    %cst_70 = arith.constant dense<0.000000e+00> : vector<128xf32>
    %138 = vector.multi_reduction <add>, %137, %cst_70 [0] : vector<8x128xf32> to vector<128xf32>
    %139 = vector.shape_cast %138 : vector<128xf32> to vector<1x128xf32>
    %cst_71 = arith.constant 1.250000e-01 : f32
    %140 = vector.broadcast %cst_71 : f32 to vector<1x128xf32>
    %141 = arith.mulf %136, %140 : vector<1x128xf32>
    %cst_72 = arith.constant 1.250000e-01 : f32
    %142 = vector.broadcast %cst_72 : f32 to vector<1x128xf32>
    %143 = arith.mulf %139, %142 : vector<1x128xf32>
    %144 = arith.mulf %141, %141 : vector<1x128xf32>
    %145 = arith.subf %143, %144 : vector<1x128xf32>
    %cst_73 = arith.constant 0.000000e+00 : f32
    %146 = vector.broadcast %cst_73 : f32 to vector<1x128xf32>
    %147 = arith.maximumf %145, %146 : vector<1x128xf32>
    %148 = arith.addf %132, %141 : vector<1x128xf32>
    %cst_74 = arith.constant 9.99999974E-6 : f32
    %149 = vector.broadcast %cst_74 : f32 to vector<1x128xf32>
    %150 = arith.addf %147, %149 : vector<1x128xf32>
    %151 = math.rsqrt %150 : vector<1x128xf32>
    %152 = arith.mulf %125, %151 : vector<1x128xf32>
    %153 = arith.mulf %148, %152 : vector<1x128xf32>
    %154 = arith.subf %127, %153 : vector<1x128xf32>
    %155 = vector.broadcast %152 : vector<1x128xf32> to vector<8x128xf32>
    %156 = arith.mulf %123, %155 : vector<8x128xf32>
    %157 = vector.broadcast %154 : vector<1x128xf32> to vector<8x128xf32>
    %158 = arith.addf %156, %157 : vector<8x128xf32>
    %cst_75 = arith.constant 0.000000e+00 : f32
    %159 = vector.broadcast %cst_75 : f32 to vector<8x128xf32>
    %160 = arith.maximumf %158, %159 : vector<8x128xf32>
    %161 = arith.truncf %160 : vector<8x128xf32> to vector<8x128xbf16>
    %cst_76 = arith.constant dense<0.000000e+00> : vector<8x128xf32>
    %162 = tpu.matmul %161, %129, %cst_76 {dimension_numbers = #tpu.dot_dimension_numbers<[1], [0], [0], [1], [0, 0, 1, 1], [], []>} : vector<8x128xbf16>, vector<128x128xbf16>, vector<8x128xf32> -> vector<8x128xf32>
    %163 = vector.broadcast %131 : vector<1x128xf32> to vector<8x128xf32>
    %164 = arith.addf %162, %163 : vector<8x128xf32>
    %c4 = arith.constant 4 : index
    %c0_77 = arith.constant 0 : index
    %c0_78 = arith.constant 0 : index
    %165 = vector.load %arg1[%c4, %c0_77, %c0_78] : memref<5x1x128xf32, #tpu.memory_space<vmem>>, vector<1x1x128xf32>
    %166 = vector.shape_cast %165 : vector<1x1x128xf32> to vector<1x128xf32>
    %c4_79 = arith.constant 4 : index
    %c0_80 = arith.constant 0 : index
    %c0_81 = arith.constant 0 : index
    %167 = vector.load %arg2[%c4_79, %c0_80, %c0_81] : memref<5x1x128xf32, #tpu.memory_space<vmem>>, vector<1x1x128xf32>
    %168 = vector.shape_cast %167 : vector<1x1x128xf32> to vector<1x128xf32>
    %c4_82 = arith.constant 4 : index
    %c0_83 = arith.constant 0 : index
    %c0_84 = arith.constant 0 : index
    %169 = vector.load %arg3[%c4_82, %c0_83, %c0_84] : memref<5x128x128xbf16, #tpu.memory_space<vmem>>, vector<1x128x128xbf16>
    %170 = vector.shape_cast %169 : vector<1x128x128xbf16> to vector<128x128xbf16>
    %c4_85 = arith.constant 4 : index
    %c0_86 = arith.constant 0 : index
    %c0_87 = arith.constant 0 : index
    %171 = vector.load %arg4[%c4_85, %c0_86, %c0_87] : memref<5x1x128xf32, #tpu.memory_space<vmem>>, vector<1x1x128xf32>
    %172 = vector.shape_cast %171 : vector<1x1x128xf32> to vector<1x128xf32>
    %173 = vector.extract_strided_slice %164 {offsets = [0, 0], sizes = [1, 128], strides = [1, 1]} : vector<8x128xf32> to vector<1x128xf32>
    %174 = vector.broadcast %173 : vector<1x128xf32> to vector<8x128xf32>
    %175 = arith.subf %164, %174 : vector<8x128xf32>
    %cst_88 = arith.constant dense<0.000000e+00> : vector<128xf32>
    %176 = vector.multi_reduction <add>, %175, %cst_88 [0] : vector<8x128xf32> to vector<128xf32>
    %177 = vector.shape_cast %176 : vector<128xf32> to vector<1x128xf32>
    %178 = arith.mulf %175, %175 : vector<8x128xf32>
    %cst_89 = arith.constant dense<0.000000e+00> : vector<128xf32>
    %179 = vector.multi_reduction <add>, %178, %cst_89 [0] : vector<8x128xf32> to vector<128xf32>
    %180 = vector.shape_cast %179 : vector<128xf32> to vector<1x128xf32>
    %cst_90 = arith.constant 1.250000e-01 : f32
    %181 = vector.broadcast %cst_90 : f32 to vector<1x128xf32>
    %182 = arith.mulf %177, %181 : vector<1x128xf32>
    %cst_91 = arith.constant 1.250000e-01 : f32
    %183 = vector.broadcast %cst_91 : f32 to vector<1x128xf32>
    %184 = arith.mulf %180, %183 : vector<1x128xf32>
    %185 = arith.mulf %182, %182 : vector<1x128xf32>
    %186 = arith.subf %184, %185 : vector<1x128xf32>
    %cst_92 = arith.constant 0.000000e+00 : f32
    %187 = vector.broadcast %cst_92 : f32 to vector<1x128xf32>
    %188 = arith.maximumf %186, %187 : vector<1x128xf32>
    %189 = arith.addf %173, %182 : vector<1x128xf32>
    %cst_93 = arith.constant 9.99999974E-6 : f32
    %190 = vector.broadcast %cst_93 : f32 to vector<1x128xf32>
    %191 = arith.addf %188, %190 : vector<1x128xf32>
    %192 = math.rsqrt %191 : vector<1x128xf32>
    %193 = arith.mulf %166, %192 : vector<1x128xf32>
    %194 = arith.mulf %189, %193 : vector<1x128xf32>
    %195 = arith.subf %168, %194 : vector<1x128xf32>
    %196 = vector.broadcast %193 : vector<1x128xf32> to vector<8x128xf32>
    %197 = arith.mulf %164, %196 : vector<8x128xf32>
    %198 = vector.broadcast %195 : vector<1x128xf32> to vector<8x128xf32>
    %199 = arith.addf %197, %198 : vector<8x128xf32>
    %cst_94 = arith.constant 0.000000e+00 : f32
    %200 = vector.broadcast %cst_94 : f32 to vector<8x128xf32>
    %201 = arith.maximumf %199, %200 : vector<8x128xf32>
    %202 = arith.truncf %201 : vector<8x128xf32> to vector<8x128xbf16>
    %cst_95 = arith.constant dense<0.000000e+00> : vector<8x128xf32>
    %203 = tpu.matmul %202, %170, %cst_95 {dimension_numbers = #tpu.dot_dimension_numbers<[1], [0], [0], [1], [0, 0, 1, 1], [], []>} : vector<8x128xbf16>, vector<128x128xbf16>, vector<8x128xf32> -> vector<8x128xf32>
    %204 = vector.broadcast %172 : vector<1x128xf32> to vector<8x128xf32>
    %205 = arith.addf %203, %204 : vector<8x128xf32>
    %c0_96 = arith.constant 0 : index
    %c0_97 = arith.constant 0 : index
    %206 = vector.load %arg5[%c0_96, %c0_97] : memref<8x128xf32, #tpu.memory_space<vmem>>, vector<8x128xf32>
    tpu.vector_store %arg5[%c0_96, %c0_97], %205 {strides = array<i32>} : memref<8x128xf32, #tpu.memory_space<vmem>>, vector<8x128xf32>,
    return
  }
}

</mosaic_0001>

<llo_original>
// kernel: tpu_custom_call.1
$region0: #{tpu_custom_call.1}
  #allocation0 [shape = 'u32[]', space=smem, size = 0x4, offset = 0x4, fixed_abs, tag = 'smem constant byte address 0x4 - core index']
  #allocation1 [shape = 'u32[144,128]{1,0:T(1,128)}', space=vmem, size = 0x12000, scoped, tag = 'internal scratch']
  %s0 = inlined_call_operand.hbm [shape: f32[8,128], index: 0, kind: input, shape index: {}]
  %s1 = inlined_call_operand.hbm [shape: f32[5,1,128], index: 1, kind: input, shape index: {}]
  %s2 = inlined_call_operand.vmem [shape: f32[5,1,128], index: 2, kind: input, shape index: {}]
  %s3 = inlined_call_operand.hbm [shape: bf16[5,128,128], index: 3, kind: input, shape index: {}]
  %s4 = inlined_call_operand.vmem [shape: f32[5,1,128], index: 4, kind: input, shape index: {}]
  %s5 = inlined_call_operand.hbm [shape: f32[8,128], index: 5, kind: output, shape index: {}]
  %s6 = sld [smem:[#allocation0]]
  $region42: #{tpu_custom_call.1} parent=0
    _
  %s8 = ssub.s32 1, %s6
  %s9 = scalar_select 0, %s8, %s6
  $region1: #{tpu_custom_call.1} parent=0
    #allocation2 [shape = 'u8[4096]{0}', space=vmem, size = 0x1000, scoped, tag = 'input window, operand 0, single buffered']
    #allocation3 [shape = 's32[1]{0}', space=sflag, size = 0x4, scoped, tag = 'scoped memory for tpu_custom_call.1']
    #allocation4 [shape = 's32[1]{0}', space=sflag, size = 0x4, scoped, tag = 'scoped memory for tpu_custom_call.1']
    #allocation5 [shape = 'u8[2560]{0}', space=vmem, size = 0xc00, scoped, tag = 'input window, operand 1, single buffered']
    #allocation6 [shape = 's32[1]{0}', space=sflag, size = 0x4, scoped, tag = 'scoped memory for tpu_custom_call.1']
    #allocation7 [shape = 'u8[163840]{0}', space=vmem, size = 0x28000, scoped, tag = 'input window, operand 3, single buffered']
    #allocation8 [shape = 'u8[4096]{0}', space=vmem, size = 0x1000, scoped, tag = 'output window, operand 0, single buffered']
    %10 = vsyncpa [#allocation3], 0
    %11 = vsyncpa [#allocation6], 0
    %12 = vsyncpa [#allocation4], 0
    // Predicated region
    $region2: #{tpu_custom_call.1} parent=1 // pred_check
      _
    $region3: #{tpu_custom_call.1} parent=1 // pred_check_branch
      %14 = sbr.rel (0) target = $region5
    $region4: #{tpu_custom_call.1} parent=1 // pred_region
      %s16 = ssub.s32 128, 128
      %17 = vsyncadd [#allocation3], %s16
      %s19 = sshll.u32 [#allocation2], 4
      %s20 = int_to_ptr.vmem [resolvable:$true] %s19
      %22 = dma.hbm_to_vmem [thread:$0]  %s0, 128, %s20, [#allocation3]
    $region5: #{tpu_custom_call.1} parent=1 // pred_fallthru
      _
    // Predicated region
    $region6: #{tpu_custom_call.1} parent=1 // pred_check
      _
    $region7: #{tpu_custom_call.1} parent=1 // pred_check_branch
      %24 = sbr.rel (0) target = $region9
    $region8: #{tpu_custom_call.1} parent=1 // pred_region
      %s26 = ssub.s32 80, 80
      %27 = vsyncadd [#allocation6], %s26
      %s28 = sshll.u32 [#allocation5], 4
      %s29 = int_to_ptr.vmem [resolvable:$true] %s28
      %34 = dma.hbm_to_vmem [thread:$0]  %s1, 80, %s29, [#allocation6], 16, 16, 1
    $region9: #{tpu_custom_call.1} parent=1 // pred_fallthru
      _
    // Predicated region
    $region10: #{tpu_custom_call.1} parent=1 // pred_check
      _
    $region11: #{tpu_custom_call.1} parent=1 // pred_check_branch
      %36 = sbr.rel (0) target = $region13
    $region12: #{tpu_custom_call.1} parent=1 // pred_region
      _
    $region13: #{tpu_custom_call.1} parent=1 // pred_fallthru
      _
    // Predicated region
    $region14: #{tpu_custom_call.1} parent=1 // pred_check
      _
    $region15: #{tpu_custom_call.1} parent=1 // pred_check_branch
      %38 = sbr.rel (0) target = $region17
    $region16: #{tpu_custom_call.1} parent=1 // pred_region
      %s40 = ssub.s32 5120, 5120
      %41 = vsyncadd [#allocation6], %s40
      %s42 = sshll.u32 [#allocation7], 4
      %s43 = int_to_ptr.vmem [resolvable:$true] %s42
      %48 = dma.hbm_to_vmem [thread:$0]  %s3, 5120, %s43, [#allocation6], 64, 64, 4
    $region17: #{tpu_custom_call.1} parent=1 // pred_fallthru
      _
    // Predicated region
    $region18: #{tpu_custom_call.1} parent=1 // pred_check
      _
    $region19: #{tpu_custom_call.1} parent=1 // pred_check_branch
      %50 = sbr.rel (0) target = $region21
    $region20: #{tpu_custom_call.1} parent=1 // pred_region
      _
    $region21: #{tpu_custom_call.1} parent=1 // pred_fallthru
      _
    // Predicated region
    $region22: #{tpu_custom_call.1} parent=1 // pred_check
      _
    $region23: #{tpu_custom_call.1} parent=1 // pred_check_branch
      %52 = sbr.rel (0) target = $region25
    $region24: #{tpu_custom_call.1} parent=1 // pred_region
      %53 = dma.done [#allocation3], 128
    $region25: #{tpu_custom_call.1} parent=1 // pred_fallthru
      _
    // Predicated region
    $region26: #{tpu_custom_call.1} parent=1 // pred_check
      _
    $region27: #{tpu_custom_call.1} parent=1 // pred_check_branch
      %55 = sbr.rel (0) target = $region29
    $region28: #{tpu_custom_call.1} parent=1 // pred_region
      %56 = dma.done [#allocation6], 80
    $region29: #{tpu_custom_call.1} parent=1 // pred_fallthru
      _
    // Predicated region
    $region30: #{tpu_custom_call.1} parent=1 // pred_check
      _
    $region31: #{tpu_custom_call.1} parent=1 // pred_check_branch
      %58 = sbr.rel (0) target = $region33
    $region32: #{tpu_custom_call.1} parent=1 // pred_region
      %59 = dma.done [#allocation6], 5120
    $region33: #{tpu_custom_call.1} parent=1 // pred_fallthru
      _
    %v61 = vld [vmem:[#allocation2] sm:$0xff]
    %v62 = vld [vmem:[#allocation5] sm:$0x1]
    %v63 = vld [vmem:[%s2] sm:$0x1]
    %v64 = vld [vmem:[#allocation7] sm:$0xf]
    %v65 = vld [vmem:[#allocation7 + $0x4] sm:$0xf]
    %v66 = vld [vmem:[#allocation7 + $0x8] sm:$0xf]
    %v67 = vld [vmem:[#allocation7 + $0xc] sm:$0xf]
    %v68 = vld [vmem:[#allocation7 + $0x10] sm:$0xf]
    %v69 = vld [vmem:[#allocation7 + $0x14] sm:$0xf]
    %v70 = vld [vmem:[#allocation7 + $0x18] sm:$0xf]
    %v71 = vld [vmem:[#allocation7 + $0x1c] sm:$0xf]
    %v72 = vld [vmem:[#allocation7 + $0x20] sm:$0xf]
    %v73 = vld [vmem:[#allocation7 + $0x24] sm:$0xf]
    %v74 = vld [vmem:[#allocation7 + $0x28] sm:$0xf]
    %v75 = vld [vmem:[#allocation7 + $0x2c] sm:$0xf]
    %v76 = vld [vmem:[#allocation7 + $0x30] sm:$0xf]
    %v77 = vld [vmem:[#allocation7 + $0x34] sm:$0xf]
    %v78 = vld [vmem:[#allocation7 + $0x38] sm:$0xf]
    %v79 = vld [vmem:[#allocation7 + $0x3c] sm:$0xf]
    %v80 = vld [vmem:[%s4] sm:$0x1]
    %v81 = vlaneseq
    %v82 = vshrl.u32 %v81, 7
    %v83 = vsub.s32 0, %v82
    %v84 = vrot.slane %v61, %v83
    %v85 = vsub.f32 %v61, %v84
    %v86 = vrot.slane %v85, 4
    %v87 = vadd.f32 %v85, %v86
    %v88 = vrot.slane %v87, 2
    %v89 = vadd.f32 %v87, %v88
    %v90 = vrot.slane %v89, 1
    %v91 = vadd.f32 %v89, %v90
    %v92 = vmul.f32 %v85, %v85
    %v93 = vrot.slane %v92, 4
    %v94 = vadd.f32 %v92, %v93
    %v95 = vrot.slane %v94, 2
    %v96 = vadd.f32 %v94, %v95
    %v97 = vrot.slane %v96, 1
    %v98 = vadd.f32 %v96, %v97
    %v99 = vmul.f32 %v91, 0.125
    %v100 = vmul.f32 %v98, 0.125
    %v101 = vmul.f32 %v99, %v99
    %v102 = vsub.f32 %v100, %v101
    %v103 = vmax.f32 %v102, 0.0
    %v104 = vadd.f32 %v61, %v99
    %v105 = vadd.f32 %v103, 1e-05
    %v106 = vrsqrt.pop %v105
    %v107 = vmul.f32 %v62, %v106
    %v108 = vmul.f32 %v104, %v107
    %v109 = vsub.f32 %v63, %v108
    %v111 = vlaneseq
    %v112 = vshrl.u32 %v111, 7
    %v113 = vsub.s32 0, %v112
    %v114 = vrot.slane %v107, %v113
    %v116 = vmul.f32 %v61, %v114
    %v118 = vlaneseq
    %v119 = vshrl.u32 %v118, 7
    %v120 = vsub.s32 0, %v119
    %v121 = vrot.slane %v109, %v120
    %v123 = vadd.f32 %v116, %v121
    %v124 = vmax.f32 %v123, 0.0
    %v125 = vpack.c.bf16 %v124, %v124
    %v127 = vlaneseq
    %v128 = vshrl.u32 %v127, 7
    %v129 = vsub.s32 0, %v128
    %v130 = vrot.slane %v80, %v129
    %v148 = vunpack.c.l.b16 %v64
    %v149 = vunpack.c.l.b16 %v65
    %v150 = vunpack.c.l.b16 %v66
    %v151 = vunpack.c.l.b16 %v67
    %v152 = vunpack.c.l.b16 %v68
    %v153 = vunpack.c.l.b16 %v69
    %v154 = vunpack.c.l.b16 %v70
    %v155 = vunpack.c.l.b16 %v71
    %v156 = vunpack.c.l.b16 %v72
    %v157 = vunpack.c.l.b16 %v73
    %v158 = vunpack.c.l.b16 %v74
    %v159 = vunpack.c.l.b16 %v75
    %v160 = vunpack.c.l.b16 %v76
    %v161 = vunpack.c.l.b16 %v77
    %v162 = vunpack.c.l.b16 %v78
    %v163 = vunpack.c.l.b16 %v79
    %v164 = vpack.c.b16 %v149, %v148
    %v165 = vpack.c.b16 %v151, %v150
    %v166 = vpack.c.b16 %v153, %v152
    %v167 = vpack.c.b16 %v155, %v154
    %v168 = vpack.c.b16 %v157, %v156
    %v169 = vpack.c.b16 %v159, %v158
    %v170 = vpack.c.b16 %v161, %v160
    %v171 = vpack.c.b16 %v163, %v162
    %180 = vmatprep.subr.bf16.mxu0 0
    %181 = vmatpush1.bf16.msra.mxu0 %v164
    %182 = vmatprep.subr.bf16.mxu0 0
    %183 = vmatpush1.bf16.msra.mxu0 %v165
    %184 = vmatprep.subr.bf16.mxu0 0
    %185 = vmatpush1.bf16.msra.mxu0 %v166
    %186 = vmatprep.subr.bf16.mxu0 0
    %187 = vmatpush1.bf16.msra.mxu0 %v167
    %188 = vmatprep.subr.bf16.mxu0 0
    %189 = vmatpush1.bf16.msra.mxu0 %v168
    %190 = vmatprep.subr.bf16.mxu0 0
    %191 = vmatpush1.bf16.msra.mxu0 %v169
    %192 = vmatprep.subr.bf16.mxu0 0
    %193 = vmatpush1.bf16.msra.mxu0 %v170
    %194 = vmatprep.subr.bf16.mxu0 0
    %195 = vmatpush1.bf16.msra.mxu0 %v171
    %196 = vmatprep.subr.bf16.mxu0 0
    %197 = vmatpush1.bf16.msra.mxu0 0
    %198 = vmatprep.subr.bf16.mxu0 0
    %199 = vmatpush1.bf16.msra.mxu0 0
    %200 = vmatprep.subr.bf16.mxu0 0
    %201 = vmatpush1.bf16.msra.mxu0 0
    %202 = vmatprep.subr.bf16.mxu0 0
    %203 = vmatpush1.bf16.msra.mxu0 0
    %204 = vmatprep.subr.bf16.mxu0 0
    %205 = vmatpush1.bf16.msra.mxu0 0
    %206 = vmatprep.subr.bf16.mxu0 0
    %207 = vmatpush1.bf16.msra.mxu0 0
    %208 = vmatprep.subr.bf16.mxu0 0
    %209 = vmatpush1.bf16.msra.mxu0 0
    %210 = vmatprep.subr.bf16.mxu0 0
    %211 = vmatpush1.bf16.msra.mxu0 0
    %212 = vmatprep.mubr.bf16.mxu0 0
    %213 = vmatmul.mubr.bf16.gmra.mrb[0].mxu0 %v125
    %v214 = vpop.f32.mrb[0].mxu0
    %v215 = vadd.f32 %v130, %v214
    %v216 = vpop.f32.mrb[0].mxu0
    %v217 = vpop.f32.mrb[0].mxu0
    %v218 = vpop.f32.mrb[0].mxu0
    %219 = vdwg.mxu0
    %s220 = scalar_lea.vmem [#allocation5], 1
    %v221 = vld [vmem:[%s220] sm:$0x1]
    %s222 = scalar_lea.vmem %s2, 1
    %v223 = vld [vmem:[%s222] sm:$0x1]
    %s224 = scalar_lea.vmem [#allocation7], 64
    %v225 = vld [vmem:[%s224] sm:$0xf]
    %v226 = vld [vmem:[%s224 + $0x4] sm:$0xf]
    %v227 = vld [vmem:[%s224 + $0x8] sm:$0xf]
    %v228 = vld [vmem:[%s224 + $0xc] sm:$0xf]
    %v229 = vld [vmem:[%s224 + $0x10] sm:$0xf]
    %v230 = vld [vmem:[%s224 + $0x14] sm:$0xf]
    %v231 = vld [vmem:[%s224 + $0x18] sm:$0xf]
    %v232 = vld [vmem:[%s224 + $0x1c] sm:$0xf]
    %v233 = vld [vmem:[%s224 + $0x20] sm:$0xf]
    %v234 = vld [vmem:[%s224 + $0x24] sm:$0xf]
    %v235 = vld [vmem:[%s224 + $0x28] sm:$0xf]
    %v236 = vld [vmem:[%s224 + $0x2c] sm:$0xf]
    %v237 = vld [vmem:[%s224 + $0x30] sm:$0xf]
    %v238 = vld [vmem:[%s224 + $0x34] sm:$0xf]
    %v239 = vld [vmem:[%s224 + $0x38] sm:$0xf]
    %v240 = vld [vmem:[%s224 + $0x3c] sm:$0xf]
    %s241 = scalar_lea.vmem %s4, 1
    %v242 = vld [vmem:[%s241] sm:$0x1]
    %v243 = vlaneseq
    %v244 = vshrl.u32 %v243, 7
    %v245 = vsub.s32 0, %v244
    %v246 = vrot.slane %v215, %v245
    %v247 = vsub.f32 %v215, %v246
    %v248 = vrot.slane %v247, 4
    %v249 = vadd.f32 %v247, %v248
    %v250 = vrot.slane %v249, 2
    %v251 = vadd.f32 %v249, %v250
    %v252 = vrot.slane %v251, 1
    %v253 = vadd.f32 %v251, %v252
    %v254 = vmul.f32 %v247, %v247
    %v255 = vrot.slane %v254, 4
    %v256 = vadd.f32 %v254, %v255
    %v257 = vrot.slane %v256, 2
    %v258 = vadd.f32 %v256, %v257
    %v259 = vrot.slane %v258, 1
    %v260 = vadd.f32 %v258, %v259
    %v261 = vmul.f32 %v253, 0.125
    %v262 = vmul.f32 %v260, 0.125
    %v263 = vmul.f32 %v261, %v261
    %v264 = vsub.f32 %v262, %v263
    %v265 = vmax.f32 %v264, 0.0
    %v266 = vadd.f32 %v215, %v261
    %v267 = vadd.f32 %v265, 1e-05
    %v268 = vrsqrt.pop %v267
    %v269 = vmul.f32 %v221, %v268
    %v270 = vmul.f32 %v266, %v269
    %v271 = vsub.f32 %v223, %v270
    %v273 = vlaneseq
    %v274 = vshrl.u32 %v273, 7
    %v275 = vsub.s32 0, %v274
    %v276 = vrot.slane %v269, %v275
    %v278 = vmul.f32 %v215, %v276
    %v280 = vlaneseq
    %v281 = vshrl.u32 %v280, 7
    %v282 = vsub.s32 0, %v281
    %v283 = vrot.slane %v271, %v282
    %v285 = vadd.f32 %v278, %v283
    %v286 = vmax.f32 %v285, 0.0
    %v287 = vpack.c.bf16 %v286, %v286
    %v289 = vlaneseq
    %v290 = vshrl.u32 %v289, 7
    %v291 = vsub.s32 0, %v290
    %v292 = vrot.slane %v242, %v291
    %v310 = vunpack.c.l.b16 %v225
    %v311 = vunpack.c.l.b16 %v226
    %v312 = vunpack.c.l.b16 %v227
    %v313 = vunpack.c.l.b16 %v228
    %v314 = vunpack.c.l.b16 %v229
    %v315 = vunpack.c.l.b16 %v230
    %v316 = vunpack.c.l.b16 %v231
    %v317 = vunpack.c.l.b16 %v232
    %v318 = vunpack.c.l.b16 %v233
    %v319 = vunpack.c.l.b16 %v234
    %v320 = vunpack.c.l.b16 %v235
    %v321 = vunpack.c.l.b16 %v236
    %v322 = vunpack.c.l.b16 %v237
    %v323 = vunpack.c.l.b16 %v238
    %v324 = vunpack.c.l.b16 %v239
    %v325 = vunpack.c.l.b16 %v240
    %v326 = vpack.c.b16 %v311, %v310
    %v327 = vpack.c.b16 %v313, %v312
    %v328 = vpack.c.b16 %v315, %v314
    %v329 = vpack.c.b16 %v317, %v316
    %v330 = vpack.c.b16 %v319, %v318
    %v331 = vpack.c.b16 %v321, %v320
    %v332 = vpack.c.b16 %v323, %v322
    %v333 = vpack.c.b16 %v325, %v324
    %342 = vmatprep.subr.bf16.mxu0 0
    %343 = vmatpush1.bf16.msra.mxu0 %v326
    %344 = vmatprep.subr.bf16.mxu0 0
    %345 = vmatpush1.bf16.msra.mxu0 %v327
    %346 = vmatprep.subr.bf16.mxu0 0
    %347 = vmatpush1.bf16.msra.mxu0 %v328
    %348 = vmatprep.subr.bf16.mxu0 0
    %349 = vmatpush1.bf16.msra.mxu0 %v329
    %350 = vmatprep.subr.bf16.mxu0 0
    %351 = vmatpush1.bf16.msra.mxu0 %v330
    %352 = vmatprep.subr.bf16.mxu0 0
    %353 = vmatpush1.bf16.msra.mxu0 %v331
    %354 = vmatprep.subr.bf16.mxu0 0
    %355 = vmatpush1.bf16.msra.mxu0 %v332
    %356 = vmatprep.subr.bf16.mxu0 0
    %357 = vmatpush1.bf16.msra.mxu0 %v333
    %358 = vmatprep.subr.bf16.mxu0 0
    %359 = vmatpush1.bf16.msra.mxu0 0
    %360 = vmatprep.subr.bf16.mxu0 0
    %361 = vmatpush1.bf16.msra.mxu0 0
    %362 = vmatprep.subr.bf16.mxu0 0
    %363 = vmatpush1.bf16.msra.mxu0 0
    %364 = vmatprep.subr.bf16.mxu0 0
    %365 = vmatpush1.bf16.msra.mxu0 0
    %366 = vmatprep.subr.bf16.mxu0 0
    %367 = vmatpush1.bf16.msra.mxu0 0
    %368 = vmatprep.subr.bf16.mxu0 0
    %369 = vmatpush1.bf16.msra.mxu0 0
    %370 = vmatprep.subr.bf16.mxu0 0
    %371 = vmatpush1.bf16.msra.mxu0 0
    %372 = vmatprep.subr.bf16.mxu0 0
    %373 = vmatpush1.bf16.msra.mxu0 0
    %374 = vmatprep.mubr.bf16.mxu0 0
    %375 = vmatmul.mubr.bf16.gmra.mrb[0].mxu0 %v287
    %v376 = vpop.f32.mrb[0].mxu0
    %v377 = vadd.f32 %v292, %v376
    %v378 = vpop.f32.mrb[0].mxu0
    %v379 = vpop.f32.mrb[0].mxu0
    %v380 = vpop.f32.mrb[0].mxu0
    %381 = vdwg.mxu0
    %s382 = scalar_lea.vmem [#allocation5], 2
    %v383 = vld [vmem:[%s382] sm:$0x1]
    %s384 = scalar_lea.vmem %s2, 2
    %v385 = vld [vmem:[%s384] sm:$0x1]
    %s386 = scalar_lea.vmem [#allocation7], 128
    %v387 = vld [vmem:[%s386] sm:$0xf]
    %v388 = vld [vmem:[%s386 + $0x4] sm:$0xf]
    %v389 = vld [vmem:[%s386 + $0x8] sm:$0xf]
    %v390 = vld [vmem:[%s386 + $0xc] sm:$0xf]
    %v391 = vld [vmem:[%s386 + $0x10] sm:$0xf]
    %v392 = vld [vmem:[%s386 + $0x14] sm:$0xf]
    %v393 = vld [vmem:[%s386 + $0x18] sm:$0xf]
    %v394 = vld [vmem:[%s386 + $0x1c] sm:$0xf]
    %v395 = vld [vmem:[%s386 + $0x20] sm:$0xf]
    %v396 = vld [vmem:[%s386 + $0x24] sm:$0xf]
    %v397 = vld [vmem:[%s386 + $0x28] sm:$0xf]
    %v398 = vld [vmem:[%s386 + $0x2c] sm:$0xf]
    %v399 = vld [vmem:[%s386 + $0x30] sm:$0xf]
    %v400 = vld [vmem:[%s386 + $0x34] sm:$0xf]
    %v401 = vld [vmem:[%s386 + $0x38] sm:$0xf]
    %v402 = vld [vmem:[%s386 + $0x3c] sm:$0xf]
    %s403 = scalar_lea.vmem %s4, 2
    %v404 = vld [vmem:[%s403] sm:$0x1]
    %v405 = vlaneseq
    %v406 = vshrl.u32 %v405, 7
    %v407 = vsub.s32 0, %v406
    %v408 = vrot.slane %v377, %v407
    %v409 = vsub.f32 %v377, %v408
    %v410 = vrot.slane %v409, 4
    %v411 = vadd.f32 %v409, %v410
    %v412 = vrot.slane %v411, 2
    %v413 = vadd.f32 %v411, %v412
    %v414 = vrot.slane %v413, 1
    %v415 = vadd.f32 %v413, %v414
    %v416 = vmul.f32 %v409, %v409
    %v417 = vrot.slane %v416, 4
    %v418 = vadd.f32 %v416, %v417
    %v419 = vrot.slane %v418, 2
    %v420 = vadd.f32 %v418, %v419
    %v421 = vrot.slane %v420, 1
    %v422 = vadd.f32 %v420, %v421
    %v423 = vmul.f32 %v415, 0.125
    %v424 = vmul.f32 %v422, 0.125
    %v425 = vmul.f32 %v423, %v423
    %v426 = vsub.f32 %v424, %v425
    %v427 = vmax.f32 %v426, 0.0
    %v428 = vadd.f32 %v377, %v423
    %v429 = vadd.f32 %v427, 1e-05
    %v430 = vrsqrt.pop %v429
    %v431 = vmul.f32 %v383, %v430
    %v432 = vmul.f32 %v428, %v431
    %v433 = vsub.f32 %v385, %v432
    %v435 = vlaneseq
    %v436 = vshrl.u32 %v435, 7
    %v437 = vsub.s32 0, %v436
    %v438 = vrot.slane %v431, %v437
    %v440 = vmul.f32 %v377, %v438
    %v442 = vlaneseq
    %v443 = vshrl.u32 %v442, 7
    %v444 = vsub.s32 0, %v443
    %v445 = vrot.slane %v433, %v444
    %v447 = vadd.f32 %v440, %v445
    %v448 = vmax.f32 %v447, 0.0
    %v449 = vpack.c.bf16 %v448, %v448
    %v451 = vlaneseq
    %v452 = vshrl.u32 %v451, 7
    %v453 = vsub.s32 0, %v452
    %v454 = vrot.slane %v404, %v453
    %v472 = vunpack.c.l.b16 %v387
    %v473 = vunpack.c.l.b16 %v388
    %v474 = vunpack.c.l.b16 %v389
    %v475 = vunpack.c.l.b16 %v390
    %v476 = vunpack.c.l.b16 %v391
    %v477 = vunpack.c.l.b16 %v392
    %v478 = vunpack.c.l.b16 %v393
    %v479 = vunpack.c.l.b16 %v394
    %v480 = vunpack.c.l.b16 %v395
    %v481 = vunpack.c.l.b16 %v396
    %v482 = vunpack.c.l.b16 %v397
    %v483 = vunpack.c.l.b16 %v398
    %v484 = vunpack.c.l.b16 %v399
    %v485 = vunpack.c.l.b16 %v400
    %v486 = vunpack.c.l.b16 %v401
    %v487 = vunpack.c.l.b16 %v402
    %v488 = vpack.c.b16 %v473, %v472
    %v489 = vpack.c.b16 %v475, %v474
    %v490 = vpack.c.b16 %v477, %v476
    %v491 = vpack.c.b16 %v479, %v478
    %v492 = vpack.c.b16 %v481, %v480
    %v493 = vpack.c.b16 %v483, %v482
    %v494 = vpack.c.b16 %v485, %v484
    %v495 = vpack.c.b16 %v487, %v486
    %504 = vmatprep.subr.bf16.mxu0 0
    %505 = vmatpush1.bf16.msra.mxu0 %v488
    %506 = vmatprep.subr.bf16.mxu0 0
    %507 = vmatpush1.bf16.msra.mxu0 %v489
    %508 = vmatprep.subr.bf16.mxu0 0
    %509 = vmatpush1.bf16.msra.mxu0 %v490
    %510 = vmatprep.subr.bf16.mxu0 0
    %511 = vmatpush1.bf16.msra.mxu0 %v491
    %512 = vmatprep.subr.bf16.mxu0 0
    %513 = vmatpush1.bf16.msra.mxu0 %v492
    %514 = vmatprep.subr.bf16.mxu0 0
    %515 = vmatpush1.bf16.msra.mxu0 %v493
    %516 = vmatprep.subr.bf16.mxu0 0
    %517 = vmatpush1.bf16.msra.mxu0 %v494
    %518 = vmatprep.subr.bf16.mxu0 0
    %519 = vmatpush1.bf16.msra.mxu0 %v495
    %520 = vmatprep.subr.bf16.mxu0 0
    %521 = vmatpush1.bf16.msra.mxu0 0
    %522 = vmatprep.subr.bf16.mxu0 0
    %523 = vmatpush1.bf16.msra.mxu0 0
    %524 = vmatprep.subr.bf16.mxu0 0
    %525 = vmatpush1.bf16.msra.mxu0 0
    %526 = vmatprep.subr.bf16.mxu0 0
    %527 = vmatpush1.bf16.msra.mxu0 0
    %528 = vmatprep.subr.bf16.mxu0 0
    %529 = vmatpush1.bf16.msra.mxu0 0
    %530 = vmatprep.subr.bf16.mxu0 0
    %531 = vmatpush1.bf16.msra.mxu0 0
    %532 = vmatprep.subr.bf16.mxu0 0
    %533 = vmatpush1.bf16.msra.mxu0 0
    %534 = vmatprep.subr.bf16.mxu0 0
    %535 = vmatpush1.bf16.msra.mxu0 0
    %536 = vmatprep.mubr.bf16.mxu0 0
    %537 = vmatmul.mubr.bf16.gmra.mrb[0].mxu0 %v449
    %v538 = vpop.f32.mrb[0].mxu0
    %v539 = vadd.f32 %v454, %v538
    %v540 = vpop.f32.mrb[0].mxu0
    %v541 = vpop.f32.mrb[0].mxu0
    %v542 = vpop.f32.mrb[0].mxu0
    %543 = vdwg.mxu0
    %s544 = scalar_lea.vmem [#allocation5], 3
    %v545 = vld [vmem:[%s544] sm:$0x1]
    %s546 = scalar_lea.vmem %s2, 3
    %v547 = vld [vmem:[%s546] sm:$0x1]
    %s548 = scalar_lea.vmem [#allocation7], 192
    %v549 = vld [vmem:[%s548] sm:$0xf]
    %v550 = vld [vmem:[%s548 + $0x4] sm:$0xf]
    %v551 = vld [vmem:[%s548 + $0x8] sm:$0xf]
    %v552 = vld [vmem:[%s548 + $0xc] sm:$0xf]
    %v553 = vld [vmem:[%s548 + $0x10] sm:$0xf]
    %v554 = vld [vmem:[%s548 + $0x14] sm:$0xf]
    %v555 = vld [vmem:[%s548 + $0x18] sm:$0xf]
    %v556 = vld [vmem:[%s548 + $0x1c] sm:$0xf]
    %v557 = vld [vmem:[%s548 + $0x20] sm:$0xf]
    %v558 = vld [vmem:[%s548 + $0x24] sm:$0xf]
    %v559 = vld [vmem:[%s548 + $0x28] sm:$0xf]
    %v560 = vld [vmem:[%s548 + $0x2c] sm:$0xf]
    %v561 = vld [vmem:[%s548 + $0x30] sm:$0xf]
    %v562 = vld [vmem:[%s548 + $0x34] sm:$0xf]
    %v563 = vld [vmem:[%s548 + $0x38] sm:$0xf]
    %v564 = vld [vmem:[%s548 + $0x3c] sm:$0xf]
    %s565 = scalar_lea.vmem %s4, 3
    %v566 = vld [vmem:[%s565] sm:$0x1]
    %v567 = vlaneseq
    %v568 = vshrl.u32 %v567, 7
    %v569 = vsub.s32 0, %v568
    %v570 = vrot.slane %v539, %v569
    %v571 = vsub.f32 %v539, %v570
    %v572 = vrot.slane %v571, 4
    %v573 = vadd.f32 %v571, %v572
    %v574 = vrot.slane %v573, 2
    %v575 = vadd.f32 %v573, %v574
    %v576 = vrot.slane %v575, 1
    %v577 = vadd.f32 %v575, %v576
    %v578 = vmul.f32 %v571, %v571
    %v579 = vrot.slane %v578, 4
    %v580 = vadd.f32 %v578, %v579
    %v581 = vrot.slane %v580, 2
    %v582 = vadd.f32 %v580, %v581
    %v583 = vrot.slane %v582, 1
    %v584 = vadd.f32 %v582, %v583
    %v585 = vmul.f32 %v577, 0.125
    %v586 = vmul.f32 %v584, 0.125
    %v587 = vmul.f32 %v585, %v585
    %v588 = vsub.f32 %v586, %v587
    %v589 = vmax.f32 %v588, 0.0
    %v590 = vadd.f32 %v539, %v585
    %v591 = vadd.f32 %v589, 1e-05
    %v592 = vrsqrt.pop %v591
    %v593 = vmul.f32 %v545, %v592
    %v594 = vmul.f32 %v590, %v593
    %v595 = vsub.f32 %v547, %v594
    %v597 = vlaneseq
    %v598 = vshrl.u32 %v597, 7
    %v599 = vsub.s32 0, %v598
    %v600 = vrot.slane %v593, %v599
    %v602 = vmul.f32 %v539, %v600
    %v604 = vlaneseq
    %v605 = vshrl.u32 %v604, 7
    %v606 = vsub.s32 0, %v605
    %v607 = vrot.slane %v595, %v606
    %v609 = vadd.f32 %v602, %v607
    %v610 = vmax.f32 %v609, 0.0
    %v611 = vpack.c.bf16 %v610, %v610
    %v613 = vlaneseq
    %v614 = vshrl.u32 %v613, 7
    %v615 = vsub.s32 0, %v614
    %v616 = vrot.slane %v566, %v615
    %v634 = vunpack.c.l.b16 %v549
    %v635 = vunpack.c.l.b16 %v550
    %v636 = vunpack.c.l.b16 %v551
    %v637 = vunpack.c.l.b16 %v552
    %v638 = vunpack.c.l.b16 %v553
    %v639 = vunpack.c.l.b16 %v554
    %v640 = vunpack.c.l.b16 %v555
    %v641 = vunpack.c.l.b16 %v556
    %v642 = vunpack.c.l.b16 %v557
    %v643 = vunpack.c.l.b16 %v558
    %v644 = vunpack.c.l.b16 %v559
    %v645 = vunpack.c.l.b16 %v560
    %v646 = vunpack.c.l.b16 %v561
    %v647 = vunpack.c.l.b16 %v562
    %v648 = vunpack.c.l.b16 %v563
    %v649 = vunpack.c.l.b16 %v564
    %v650 = vpack.c.b16 %v635, %v634
    %v651 = vpack.c.b16 %v637, %v636
    %v652 = vpack.c.b16 %v639, %v638
    %v653 = vpack.c.b16 %v641, %v640
    %v654 = vpack.c.b16 %v643, %v642
    %v655 = vpack.c.b16 %v645, %v644
    %v656 = vpack.c.b16 %v647, %v646
    %v657 = vpack.c.b16 %v649, %v648
    %666 = vmatprep.subr.bf16.mxu0 0
    %667 = vmatpush1.bf16.msra.mxu0 %v650
    %668 = vmatprep.subr.bf16.mxu0 0
    %669 = vmatpush1.bf16.msra.mxu0 %v651
    %670 = vmatprep.subr.bf16.mxu0 0
    %671 = vmatpush1.bf16.msra.mxu0 %v652
    %672 = vmatprep.subr.bf16.mxu0 0
    %673 = vmatpush1.bf16.msra.mxu0 %v653
    %674 = vmatprep.subr.bf16.mxu0 0
    %675 = vmatpush1.bf16.msra.mxu0 %v654
    %676 = vmatprep.subr.bf16.mxu0 0
    %677 = vmatpush1.bf16.msra.mxu0 %v655
    %678 = vmatprep.subr.bf16.mxu0 0
    %679 = vmatpush1.bf16.msra.mxu0 %v656
    %680 = vmatprep.subr.bf16.mxu0 0
    %681 = vmatpush1.bf16.msra.mxu0 %v657
    %682 = vmatprep.subr.bf16.mxu0 0
    %683 = vmatpush1.bf16.msra.mxu0 0
    %684 = vmatprep.subr.bf16.mxu0 0
    %685 = vmatpush1.bf16.msra.mxu0 0
    %686 = vmatprep.subr.bf16.mxu0 0
    %687 = vmatpush1.bf16.msra.mxu0 0
    %688 = vmatprep.subr.bf16.mxu0 0
    %689 = vmatpush1.bf16.msra.mxu0 0
    %690 = vmatprep.subr.bf16.mxu0 0
    %691 = vmatpush1.bf16.msra.mxu0 0
    %692 = vmatprep.subr.bf16.mxu0 0
    %693 = vmatpush1.bf16.msra.mxu0 0
    %694 = vmatprep.subr.bf16.mxu0 0
    %695 = vmatpush1.bf16.msra.mxu0 0
    %696 = vmatprep.subr.bf16.mxu0 0
    %697 = vmatpush1.bf16.msra.mxu0 0
    %698 = vmatprep.mubr.bf16.mxu0 0
    %699 = vmatmul.mubr.bf16.gmra.mrb[0].mxu0 %v611
    %v700 = vpop.f32.mrb[0].mxu0
    %v701 = vadd.f32 %v616, %v700
    %v702 = vpop.f32.mrb[0].mxu0
    %v703 = vpop.f32.mrb[0].mxu0
    %v704 = vpop.f32.mrb[0].mxu0
    %705 = vdwg.mxu0
    %s706 = scalar_lea.vmem [#allocation5], 4
    %v707 = vld [vmem:[%s706] sm:$0x1]
    %s708 = scalar_lea.vmem %s2, 4
    %v709 = vld [vmem:[%s708] sm:$0x1]
    %s710 = scalar_lea.vmem [#allocation7], 256
    %v711 = vld [vmem:[%s710] sm:$0xf]
    %v712 = vld [vmem:[%s710 + $0x4] sm:$0xf]
    %v713 = vld [vmem:[%s710 + $0x8] sm:$0xf]
    %v714 = vld [vmem:[%s710 + $0xc] sm:$0xf]
    %v715 = vld [vmem:[%s710 + $0x10] sm:$0xf]
    %v716 = vld [vmem:[%s710 + $0x14] sm:$0xf]
    %v717 = vld [vmem:[%s710 + $0x18] sm:$0xf]
    %v718 = vld [vmem:[%s710 + $0x1c] sm:$0xf]
    %v719 = vld [vmem:[%s710 + $0x20] sm:$0xf]
    %v720 = vld [vmem:[%s710 + $0x24] sm:$0xf]
    %v721 = vld [vmem:[%s710 + $0x28] sm:$0xf]
    %v722 = vld [vmem:[%s710 + $0x2c] sm:$0xf]
    %v723 = vld [vmem:[%s710 + $0x30] sm:$0xf]
    %v724 = vld [vmem:[%s710 + $0x34] sm:$0xf]
    %v725 = vld [vmem:[%s710 + $0x38] sm:$0xf]
    %v726 = vld [vmem:[%s710 + $0x3c] sm:$0xf]
    %s727 = scalar_lea.vmem %s4, 4
    %v728 = vld [vmem:[%s727] sm:$0x1]
    %v729 = vlaneseq
    %v730 = vshrl.u32 %v729, 7
    %v731 = vsub.s32 0, %v730
    %v732 = vrot.slane %v701, %v731
    %v733 = vsub.f32 %v701, %v732
    %v734 = vrot.slane %v733, 4
    %v735 = vadd.f32 %v733, %v734
    %v736 = vrot.slane %v735, 2
    %v737 = vadd.f32 %v735, %v736
    %v738 = vrot.slane %v737, 1
    %v739 = vadd.f32 %v737, %v738
    %v740 = vmul.f32 %v733, %v733
    %v741 = vrot.slane %v740, 4
    %v742 = vadd.f32 %v740, %v741
    %v743 = vrot.slane %v742, 2
    %v744 = vadd.f32 %v742, %v743
    %v745 = vrot.slane %v744, 1
    %v746 = vadd.f32 %v744, %v745
    %v747 = vmul.f32 %v739, 0.125
    %v748 = vmul.f32 %v746, 0.125
    %v749 = vmul.f32 %v747, %v747
    %v750 = vsub.f32 %v748, %v749
    %v751 = vmax.f32 %v750, 0.0
    %v752 = vadd.f32 %v701, %v747
    %v753 = vadd.f32 %v751, 1e-05
    %v754 = vrsqrt.pop %v753
    %v755 = vmul.f32 %v707, %v754
    %v756 = vmul.f32 %v752, %v755
    %v757 = vsub.f32 %v709, %v756
    %v759 = vlaneseq
    %v760 = vshrl.u32 %v759, 7
    %v761 = vsub.s32 0, %v760
    %v762 = vrot.slane %v755, %v761
    %v764 = vmul.f32 %v701, %v762
    %v766 = vlaneseq
    %v767 = vshrl.u32 %v766, 7
    %v768 = vsub.s32 0, %v767
    %v769 = vrot.slane %v757, %v768
    %v771 = vadd.f32 %v764, %v769
    %v772 = vmax.f32 %v771, 0.0
    %v773 = vpack.c.bf16 %v772, %v772
    %v775 = vlaneseq
    %v776 = vshrl.u32 %v775, 7
    %v777 = vsub.s32 0, %v776
    %v778 = vrot.slane %v728, %v777
    %v796 = vunpack.c.l.b16 %v711
    %v797 = vunpack.c.l.b16 %v712
    %v798 = vunpack.c.l.b16 %v713
    %v799 = vunpack.c.l.b16 %v714
    %v800 = vunpack.c.l.b16 %v715
    %v801 = vunpack.c.l.b16 %v716
    %v802 = vunpack.c.l.b16 %v717
    %v803 = vunpack.c.l.b16 %v718
    %v804 = vunpack.c.l.b16 %v719
    %v805 = vunpack.c.l.b16 %v720
    %v806 = vunpack.c.l.b16 %v721
    %v807 = vunpack.c.l.b16 %v722
    %v808 = vunpack.c.l.b16 %v723
    %v809 = vunpack.c.l.b16 %v724
    %v810 = vunpack.c.l.b16 %v725
    %v811 = vunpack.c.l.b16 %v726
    %v812 = vpack.c.b16 %v797, %v796
    %v813 = vpack.c.b16 %v799, %v798
    %v814 = vpack.c.b16 %v801, %v800
    %v815 = vpack.c.b16 %v803, %v802
    %v816 = vpack.c.b16 %v805, %v804
    %v817 = vpack.c.b16 %v807, %v806
    %v818 = vpack.c.b16 %v809, %v808
    %v819 = vpack.c.b16 %v811, %v810
    %828 = vmatprep.subr.bf16.mxu0 0
    %829 = vmatpush1.bf16.msra.mxu0 %v812
    %830 = vmatprep.subr.bf16.mxu0 0
    %831 = vmatpush1.bf16.msra.mxu0 %v813
    %832 = vmatprep.subr.bf16.mxu0 0
    %833 = vmatpush1.bf16.msra.mxu0 %v814
    %834 = vmatprep.subr.bf16.mxu0 0
    %835 = vmatpush1.bf16.msra.mxu0 %v815
    %836 = vmatprep.subr.bf16.mxu0 0
    %837 = vmatpush1.bf16.msra.mxu0 %v816
    %838 = vmatprep.subr.bf16.mxu0 0
    %839 = vmatpush1.bf16.msra.mxu0 %v817
    %840 = vmatprep.subr.bf16.mxu0 0
    %841 = vmatpush1.bf16.msra.mxu0 %v818
    %842 = vmatprep.subr.bf16.mxu0 0
    %843 = vmatpush1.bf16.msra.mxu0 %v819
    %844 = vmatprep.subr.bf16.mxu0 0
    %845 = vmatpush1.bf16.msra.mxu0 0
    %846 = vmatprep.subr.bf16.mxu0 0
    %847 = vmatpush1.bf16.msra.mxu0 0
    %848 = vmatprep.subr.bf16.mxu0 0
    %849 = vmatpush1.bf16.msra.mxu0 0
    %850 = vmatprep.subr.bf16.mxu0 0
    %851 = vmatpush1.bf16.msra.mxu0 0
    %852 = vmatprep.subr.bf16.mxu0 0
    %853 = vmatpush1.bf16.msra.mxu0 0
    %854 = vmatprep.subr.bf16.mxu0 0
    %855 = vmatpush1.bf16.msra.mxu0 0
    %856 = vmatprep.subr.bf16.mxu0 0
    %857 = vmatpush1.bf16.msra.mxu0 0
    %858 = vmatprep.subr.bf16.mxu0 0
    %859 = vmatpush1.bf16.msra.mxu0 0
    %860 = vmatprep.mubr.bf16.mxu0 0
    %861 = vmatmul.mubr.bf16.gmra.mrb[0].mxu0 %v773
    %v862 = vpop.f32.mrb[0].mxu0
    %v863 = vadd.f32 %v778, %v862
    %v864 = vpop.f32.mrb[0].mxu0
    %v865 = vpop.f32.mrb[0].mxu0
    %v866 = vpop.f32.mrb[0].mxu0
    %867 = vdwg.mxu0
    %868 = vst [vmem:[#allocation8] sm:$0xff] %v863
    // Predicated region
    $region34: #{tpu_custom_call.1} parent=1 // pred_check
      _
    $region35: #{tpu_custom_call.1} parent=1 // pred_check_branch
      %870 = sbr.rel (0) target = $region37
    $region36: #{tpu_custom_call.1} parent=1 // pred_region
      %s872 = ssub.s32 128, 128
      %873 = vsyncadd [#allocation4], %s872
      %s875 = sshll.u32 [#allocation8], 4
      %s876 = int_to_ptr.vmem [resolvable:$true] %s875
      %878 = dma.vmem_to_hbm [thread:$0]  %s876, 128, %s5, [#allocation4]
    $region37: #{tpu_custom_call.1} parent=1 // pred_fallthru
      _
    // Predicated region
    $region38: #{tpu_custom_call.1} parent=1 // pred_check
      _
    $region39: #{tpu_custom_call.1} parent=1 // pred_check_branch
      %880 = sbr.rel (0) target = $region41
    $region40: #{tpu_custom_call.1} parent=1 // pred_region
      %881 = dma.done [#allocation4], 128
    $region41: #{tpu_custom_call.1} parent=1 // pred_fallthru
      _
    %882 = vsyncpa [#allocation3], 1
    %883 = vsyncpa [#allocation6], 1
    %884 = vsyncpa [#allocation4], 1

</llo_original>
